<compile_context>
chip_gen: v5e
topology: v5e:2x2
jax: 0.10.0
libtpu: 0.0.40
codegen_flags: <defaults>
</compile_context>

<pallas_src>
import jax
import jax.numpy as jnp
from jax.experimental import pallas as pl
from jax.experimental.pallas import tpu as pltpu


# ----------------------------------------------------------------------------
# Zero-copy (aliased) identity — primary path.
# ----------------------------------------------------------------------------
def _identity_alias_kernel(x_hbm_ref, o_hbm_ref):
    # Output aliases input (input_output_aliases={0: 0}); the data is already
    # in the output buffer, so there is nothing to do. Deliberately empty:
    # TensorCore cannot touch HBM refs directly, and no DMA is needed.
    del x_hbm_ref, o_hbm_ref


def identity(x):
    """Pallas TPU identity that moves zero bytes (output aliases input)."""
    return pl.pallas_call(
        _identity_alias_kernel,
        out_shape=jax.ShapeDtypeStruct(x.shape, x.dtype),
        in_specs=[pl.BlockSpec(memory_space=pl.ANY)],   # leave input in HBM
        out_specs=pl.BlockSpec(memory_space=pl.ANY),    # output = same HBM buffer
        input_output_aliases={0: 0},
        compiler_params=pltpu.CompilerParams(has_side_effects=True),
    )(x)


# ----------------------------------------------------------------------------
# Explicit-copy identity — for callers that need a distinct output buffer.
# ----------------------------------------------------------------------------
_MULTI_DMA_THRESHOLD_BYTES = 16 * 1024 * 1024  # only split large copies


def _copy_kernel_single(x_hbm_ref, o_hbm_ref, sem):
    # One whole-array HBM->HBM DMA: issue it and wait for completion.
    copy = pltpu.make_async_copy(x_hbm_ref, o_hbm_ref, sem)
    copy.start()
    copy.wait()


def _make_multi_dma_copy_kernel(num_slices, rows_per_slice):
    def kernel(x_hbm_ref, o_hbm_ref, sems):
        copies = []
        for i in range(num_slices):
            sl = pl.ds(i * rows_per_slice, rows_per_slice)
            copies.append(
                pltpu.make_async_copy(x_hbm_ref.at[sl], o_hbm_ref.at[sl], sems.at[i])
            )
        # Issue every DMA before waiting on any, so all are in flight at once.
        for cp in copies:
            cp.start()
        for cp in copies:
            cp.wait()
    return kernel


def identity_copy(x, num_slices=None):
    """Identity that materializes a distinct output buffer via HBM->HBM DMA.

    Small/medium tensors: one whole-array DMA. Large tensors (>= 16 MiB):
    split along the leading dim into several concurrent DMAs.
    """
    if num_slices is None:
        num_slices = 1
        if x.ndim >= 1 and x.nbytes >= _MULTI_DMA_THRESHOLD_BYTES:
            for k in (8, 4, 2):
                if x.shape[0] % k == 0 and x.shape[0] >= k:
                    num_slices = k
                    break

    if num_slices <= 1 or x.ndim == 0 or x.shape[0] % num_slices != 0:
        kernel = _copy_kernel_single
        scratch = [pltpu.SemaphoreType.DMA(())]
    else:
        kernel = _make_multi_dma_copy_kernel(num_slices, x.shape[0] // num_slices)
        scratch = [pltpu.SemaphoreType.DMA((num_slices,))]

    return pl.pallas_call(
        kernel,
        out_shape=jax.ShapeDtypeStruct(x.shape, x.dtype),
        in_specs=[pl.BlockSpec(memory_space=pl.ANY)],   # stay in HBM, no auto-DMA
        out_specs=pl.BlockSpec(memory_space=pl.ANY),
        scratch_shapes=scratch,
    )(x)


if __name__ == "__main__":
    key = jax.random.PRNGKey(0)
    # Small NCHW input consistent with a typical conv-net feature map.
    x = jax.random.normal(key, (2, 4, 16, 16), dtype=jnp.float32)

    # 1) Primary zero-copy aliased identity.
    y = jax.block_until_ready(identity(x))
    assert y.shape == x.shape, f"shape mismatch: {y.shape} vs {x.shape}"
    assert y.dtype == x.dtype, f"dtype mismatch: {y.dtype} vs {x.dtype}"
    assert bool(jnp.array_equal(y, x)), "aliased identity output differs from input"

    # 2) Explicit-copy identity (single whole-array DMA at this size).
    y2 = jax.block_until_ready(identity_copy(x))
    assert y2.shape == x.shape and y2.dtype == x.dtype
    assert bool(jnp.array_equal(y2, x)), "copy identity output differs from input"

    # 3) Multi-DMA copy path, exercised explicitly at a small size to verify it
    #    compiles (auto mode only enables it for >= 16 MiB arrays).
    x_big = jax.random.normal(jax.random.PRNGKey(0), (8, 4, 16, 16), dtype=jnp.float32)
    y3 = jax.block_until_ready(identity_copy(x_big, num_slices=4))
    assert bool(jnp.array_equal(y3, x_big)), "multi-DMA identity output differs"

    print("KERNEL_OK")
</pallas_src>

<mosaic_0001>
module attributes {stable_mosaic.version = 11 : i64} {
  func.func @_identity_alias_kernel(%arg0: memref<2x4x16x16xf32, #tpu.memory_space<any>>, %arg1: memref<2x4x16x16xf32, #tpu.memory_space<any>>) attributes {dimension_semantics = [], scalar_prefetch = 0 : i64, scratch_operands = 0 : i64, tpu.core_type = #tpu.core_type<tc>} {
    return
  }
}

</mosaic_0001>

<llo_original>
// kernel: tpu_custom_call.1
$region0: #{tpu_custom_call.1}
  #allocation0 [shape = 'u32[]', space=smem, size = 0x4, offset = 0x4, fixed_abs, tag = 'smem constant byte address 0x4 - core index']
  #allocation1 [shape = 'u32[72,128]{1,0:T(1,128)}', space=vmem, size = 0x9000, scoped, tag = 'internal scratch']
  %s0 = inlined_call_operand.hbm [shape: f32[2,4,16,16], index: 0, kind: input, shape index: {}, may-alias: {0,1}]
  %s1 = inlined_call_operand.hbm [shape: f32[2,4,16,16], index: 1, kind: output, shape index: {}, may-alias: {0,1}]
  %s2 = sld [smem:[#allocation0]]
  $region2: #{tpu_custom_call.1} parent=0
    _
  %s4 = ssub.s32 1, %s2
  %s5 = scalar_select 0, %s4, %s2

</llo_original>
